<compile_context>
chip_gen: v6e
topology: v6e:2x2x1
jax: 0.10.0
libtpu: 0.0.40
codegen_flags: <defaults>
</compile_context>

<pallas_src>
import math

import jax
import jax.numpy as jnp
from jax.experimental import pallas as pl
from jax.experimental.pallas import tpu as pltpu

# dataset statistics (subset of the module's MEANS/STDS tables)
MEANS = dict(
    imagenet=[0.485, 0.456, 0.406],
    cifar10=[0.4914009, 0.48215896, 0.4465308],
    galaxy=[0.03294565, 0.04387402, 0.04995899],
    clip=[0.48145466, 0.4578275, 0.40821073],
    stl10=[0.43, 0.42, 0.39],
    stl10_unlabeled=[0.43, 0.42, 0.39],
)
STDS = dict(
    imagenet=[0.229, 0.224, 0.225],
    cifar10=[0.24703279, 0.24348423, 0.26158753],
    galaxy=[0.07004886, 0.07964786, 0.09574898],
    clip=[0.26862954, 0.26130258, 0.27577711],
    stl10=[0.27, 0.26, 0.27],
    stl10_unlabeled=[0.27, 0.26, 0.27],
)

_TARGET_BLOCK_BYTES = 8 * 1024 * 1024   # ~8 MiB per (rows, lanes) block
_ROW_CAP = 512                          # max sublane rows per block
_VMEM_LIMIT_BYTES = 48 * 1024 * 1024    # 2 arrays x 2 bufs x 8 MiB = 32 MiB used


def _sublane_align(itemsize):
    """Minimum sublane multiple per dtype width (f32:8, bf16:16, int8/fp8:32)."""
    return {4: 8, 2: 16, 1: 32}.get(itemsize, 8)


def _round_up(v, m):
    return ((v + m - 1) // m) * m


def _pick_rows(r_total, unit, cap):
    """Row-block size.

    Full extent when small; otherwise prefer an exact divisor of r_total that
    is a multiple of `unit` (= lcm(sublane_align, C), so every block start is
    a multiple of C and sublane-aligned); otherwise a `unit`-aligned size with
    a masked cdiv tail.
    """
    if r_total <= cap:
        return r_total
    best = None
    r = unit
    while r <= cap:
        if r_total % r == 0:
            best = r
        r += unit
    if best is not None:
        return best
    return max(unit, (cap // unit) * unit)


def _pick_lanes(l_total, budget_elems):
    """Lane-block size: full extent if it fits the element budget, else the
    largest multiple of 128 dividing l_total within budget, else the budget
    itself (cdiv grid handles the masked tail block)."""
    budget = max(128, (budget_elems // 128) * 128)
    if l_total <= budget:
        return l_total
    best = None
    l = 128
    while l <= budget:
        if l_total % l == 0:
            best = l
        l += 128
    if best is not None:
        return best
    return budget


def _make_unnormalize_kernel(r_block, n_channels, means, stds):
    """Kernel with per-channel constants baked in (no scale/bias inputs).

    Valid because every row-block start index is a multiple of n_channels, so
    channel(local_row) == local_row % n_channels in every block.
    """
    s = tuple(float(v) for v in stds)
    m = tuple(float(v) for v in means)

    def kernel(x_ref, o_ref):
        ch = jax.lax.broadcasted_iota(jnp.int32, (r_block, 1), 0) % n_channels
        scale = jnp.full((r_block, 1), s[0], dtype=jnp.float32)
        bias = jnp.full((r_block, 1), m[0], dtype=jnp.float32)
        for c in range(1, n_channels):
            scale = jnp.where(ch == c, jnp.float32(s[c]), scale)
            bias = jnp.where(ch == c, jnp.float32(m[c]), bias)
        x = x_ref[...].astype(jnp.float32)
        o_ref[...] = (x * scale + bias).astype(o_ref.dtype)

    return kernel


def unnormalize(x, dataset="cifar10"):
    """Pallas equivalent of UnNormalizer(dataset)(x) for NCHW float input."""
    means = MEANS[dataset.lower()]
    stds = STDS[dataset.lower()]
    N, C, H, W = x.shape
    assert C == len(means), f"expected {len(means)} channels, got {C}"

    r_total = N * C
    l_total = H * W

    # Free contiguous reshape: row index = n*C + c, lanes = flattened H*W.
    x2 = x.reshape(r_total, l_total)

    itemsize = x.dtype.itemsize
    sub_align = _sublane_align(itemsize)
    # lcm(sublane alignment, C): keeps every row block both sublane-aligned
    # and channel-pattern invariant across blocks.
    unit = (sub_align * C) // math.gcd(sub_align, C)
    target_elems = max(1, _TARGET_BLOCK_BYTES // itemsize)

    R = _pick_rows(r_total, unit, _ROW_CAP)
    L = _pick_lanes(l_total, target_elems // max(R, 1))

    # v7x megacore: guarantee >= 2 parallel blocks when there is enough data
    # (split lanes; this keeps the per-row channel pattern intact).
    if pl.cdiv(r_total, R) == 1 and pl.cdiv(l_total, L) == 1 and l_total >= 256:
        L = _round_up(pl.cdiv(l_total, 2), 128)

    grid = (pl.cdiv(r_total, R), pl.cdiv(l_total, L))

    kernel = _make_unnormalize_kernel(R, C, means, stds)

    out2 = pl.pallas_call(
        kernel,
        out_shape=jax.ShapeDtypeStruct((r_total, l_total), x.dtype),
        grid=grid,
        in_specs=[pl.BlockSpec((R, L), lambda i, j: (i, j))],
        out_specs=pl.BlockSpec((R, L), lambda i, j: (i, j)),
        compiler_params=pltpu.CompilerParams(
            dimension_semantics=("parallel", "parallel"),
            vmem_limit_bytes=_VMEM_LIMIT_BYTES,
        ),
    )(x2)

    return out2.reshape(N, C, H, W)


def _reference(x, dataset):
    std = jnp.asarray(STDS[dataset], dtype=jnp.float32)[None, :, None, None]
    mean_ = jnp.asarray(MEANS[dataset], dtype=jnp.float32)[None, :, None, None]
    return (x.astype(jnp.float32) * std + mean_).astype(x.dtype)


if __name__ == "__main__":
    key = jax.random.PRNGKey(0)
    k1, k2 = jax.random.split(key)

    # Primary small NCHW input: batch=2, channels=3 (dataset stats are 3-channel), 16x16.
    x = jax.random.normal(k1, (2, 3, 16, 16), dtype=jnp.float32)
    out = jax.block_until_ready(unnormalize(x, dataset="cifar10"))
    ref = _reference(x, "cifar10")
    assert out.shape == x.shape and out.dtype == x.dtype
    assert jnp.allclose(out, ref, atol=1e-6, rtol=1e-6), "mismatch vs reference"

    # Non-128-divisible spatial extent (exercises the masked cdiv tail path).
    x2 = jax.random.normal(k2, (2, 3, 20, 20), dtype=jnp.float32)
    out2 = jax.block_until_ready(unnormalize(x2, dataset="imagenet"))
    ref2 = _reference(x2, "imagenet")
    assert jnp.allclose(out2, ref2, atol=1e-6, rtol=1e-6), "mismatch vs reference (odd shape)"

    print("KERNEL_OK")
</pallas_src>

<mosaic_0001>
module attributes {stable_mosaic.version = 11 : i64} {
  func.func @kernel(%arg0: i32, %arg1: i32, %arg2: memref<6x128xf32, #tpu.memory_space<vmem>>, %arg3: memref<6x128xf32, #tpu.memory_space<vmem>>) attributes {dimension_semantics = [#tpu.dimension_semantics<parallel>, #tpu.dimension_semantics<parallel>], iteration_bounds = array<i64: 1, 2>, scalar_prefetch = 0 : i64, scratch_operands = 0 : i64, tpu.core_type = #tpu.core_type<tc>, window_params = [{transform_indices = @transform_0, window_bounds = array<i64: 6, 128>}, {transform_indices = @transform_1, window_bounds = array<i64: 6, 128>}]} {
    %0 = tpu.iota {dimensions = array<i32: 0>} : vector<6x1xi32>
    %c3_i32 = arith.constant 3 : i32
    %c0_i32 = arith.constant 0 : i32
    %1 = arith.cmpi eq, %c3_i32, %c0_i32 : i32
    %c1_i32 = arith.constant 1 : i32
    %2 = arith.select %1, %c1_i32, %c3_i32 : i32
    %3 = vector.broadcast %2 : i32 to vector<6x1xi32>
    %4 = arith.remsi %0, %3 : vector<6x1xi32>
    %c0_i32_0 = arith.constant 0 : i32
    %5 = vector.broadcast %c0_i32_0 : i32 to vector<6x1xi32>
    %6 = arith.cmpi ne, %4, %5 : vector<6x1xi32>
    %c0_i32_1 = arith.constant 0 : i32
    %7 = vector.broadcast %c0_i32_1 : i32 to vector<6x1xi32>
    %8 = arith.cmpi slt, %4, %7 : vector<6x1xi32>
    %c0_i32_2 = arith.constant 0 : i32
    %9 = arith.cmpi slt, %2, %c0_i32_2 : i32
    %10 = vector.broadcast %9 : i1 to vector<6x1xi1>
    %11 = vector.broadcast %10 : vector<6x1xi1> to vector<6x1xi1>
    %12 = arith.xori %8, %11 : vector<6x1xi1>
    %13 = arith.andi %12, %6 : vector<6x1xi1>
    %14 = vector.broadcast %2 : i32 to vector<6x1xi32>
    %15 = arith.addi %4, %14 : vector<6x1xi32>
    %16 = arith.select %13, %15, %4 : vector<6x1xi1>, vector<6x1xi32>
    %cst = arith.constant 0.247032791 : f32
    %17 = vector.broadcast %cst : f32 to vector<6x1xf32>
    %cst_3 = arith.constant 0.491400898 : f32
    %18 = vector.broadcast %cst_3 : f32 to vector<6x1xf32>
    %c1_i32_4 = arith.constant 1 : i32
    %19 = vector.broadcast %c1_i32_4 : i32 to vector<6x1xi32>
    %20 = arith.cmpi eq, %16, %19 : vector<6x1xi32>
    %cst_5 = arith.constant 0.243484229 : f32
    %21 = vector.broadcast %cst_5 : f32 to vector<6x1xf32>
    %22 = arith.select %20, %21, %17 : vector<6x1xi1>, vector<6x1xf32>
    %c1_i32_6 = arith.constant 1 : i32
    %23 = vector.broadcast %c1_i32_6 : i32 to vector<6x1xi32>
    %24 = arith.cmpi eq, %16, %23 : vector<6x1xi32>
    %cst_7 = arith.constant 0.482158959 : f32
    %25 = vector.broadcast %cst_7 : f32 to vector<6x1xf32>
    %26 = arith.select %24, %25, %18 : vector<6x1xi1>, vector<6x1xf32>
    %c2_i32 = arith.constant 2 : i32
    %27 = vector.broadcast %c2_i32 : i32 to vector<6x1xi32>
    %28 = arith.cmpi eq, %16, %27 : vector<6x1xi32>
    %cst_8 = arith.constant 0.26158753 : f32
    %29 = vector.broadcast %cst_8 : f32 to vector<6x1xf32>
    %30 = arith.select %28, %29, %22 : vector<6x1xi1>, vector<6x1xf32>
    %c2_i32_9 = arith.constant 2 : i32
    %31 = vector.broadcast %c2_i32_9 : i32 to vector<6x1xi32>
    %32 = arith.cmpi eq, %16, %31 : vector<6x1xi32>
    %cst_10 = arith.constant 0.446530789 : f32
    %33 = vector.broadcast %cst_10 : f32 to vector<6x1xf32>
    %34 = arith.select %32, %33, %26 : vector<6x1xi1>, vector<6x1xf32>
    %c0 = arith.constant 0 : index
    %c0_11 = arith.constant 0 : index
    %35 = vector.load %arg2[%c0, %c0_11] : memref<6x128xf32, #tpu.memory_space<vmem>>, vector<6x128xf32>
    %36 = vector.broadcast %30 : vector<6x1xf32> to vector<6x128xf32>
    %37 = arith.mulf %35, %36 : vector<6x128xf32>
    %38 = vector.broadcast %34 : vector<6x1xf32> to vector<6x128xf32>
    %39 = arith.addf %37, %38 : vector<6x128xf32>
    %c0_12 = arith.constant 0 : index
    %c0_13 = arith.constant 0 : index
    %40 = vector.load %arg3[%c0_12, %c0_13] : memref<6x128xf32, #tpu.memory_space<vmem>>, vector<6x128xf32>
    tpu.vector_store %arg3[%c0_12, %c0_13], %39 {strides = array<i32>} : memref<6x128xf32, #tpu.memory_space<vmem>>, vector<6x128xf32>,
    return
  }
  func.func @transform_0(%arg0: i32, %arg1: i32) -> (i32, i32) {
    %c0_i32 = arith.constant 0 : i32
    return %arg0, %arg1 : i32, i32
  }
  func.func @transform_1(%arg0: i32, %arg1: i32) -> (i32, i32) {
    %c0_i32 = arith.constant 0 : i32
    return %arg0, %arg1 : i32, i32
  }
}

</mosaic_0001>

<llo_original>
// kernel: tpu_custom_call.1
$region0: #{tpu_custom_call.1}
  #allocation0 [shape = 'u32[]', space=smem, size = 0x4, offset = 0x4, fixed_abs, tag = 'smem constant byte address 0x4 - core index']
  #allocation1 [shape = 'u32[144,128]{1,0:T(1,128)}', space=vmem, size = 0x12000, scoped, tag = 'internal scratch']
  %s0 = inlined_call_operand.hbm [shape: f32[6,256], index: 0, kind: input, shape index: {}]
  %s1 = inlined_call_operand.hbm [shape: f32[6,256], index: 1, kind: output, shape index: {}]
  %s2 = sld [smem:[#allocation0]]
  $region41: #{tpu_custom_call.1} parent=0
    _
  %s4 = ssub.s32 1, %s2
  %s5 = scalar_select 0, %s4, %s2
  $region1: #{tpu_custom_call.1} parent=0
    #allocation2 [shape = 'u8[8192]{0}', space=vmem, size = 0x2000, scoped, tag = 'input window, operand 0']
    #allocation3 [shape = 's32[2]{0}', space=sflag, size = 0x8, scoped, tag = 'scoped memory for tpu_custom_call.1']
    #allocation4 [shape = 's32[2]{0}', space=sflag, size = 0x8, scoped, tag = 'scoped memory for tpu_custom_call.1']
    #allocation5 [shape = 'u8[8192]{0}', space=vmem, size = 0x2000, scoped, tag = 'output window, operand 0']
    %6 = vsyncpa [#allocation3], 0
    %s7 = scalar_lea.sflag [#allocation3], 1
    %8 = vsyncpa %s7, 0
    %9 = vsyncpa [#allocation4], 0
    %s10 = scalar_lea.sflag [#allocation4], 1
    %11 = vsyncpa %s10, 0
    loop: start=0, step=1, limit=4
    $region2: #{tpu_custom_call.1} parent=1 // loop_pre_header
      _
    $region3: #{tpu_custom_call.1} parent=1 // loop_header
      %s13 = sphi 0, %s17
      %p14 = scmp.ge.s32.totalorder %s13, 4
      %s20 = sphi 0, %s32
      %s21 = sphi 0, %s28
      %s22 = sphi 0, %s20
      %s23 = sphi 0, %s21
      %s24 = sphi 0, %s22
      %s25 = sphi 0, %s23
      %s37 = sphi 0, %s39
      %s40 = sphi 0, %s37
      %s41 = sphi 0, %s40
      %s57 = sphi 0, %s41
      %s65 = sphi 0, %s67
      %s68 = sphi 0, %s65
      %s69 = sphi 0, %s68
      %s85 = sphi 0, %s69
    $region4: #{tpu_custom_call.1} parent=1 // loop_header_branch
      %16 = sbr.rel (%p14) target = $region8
    $region5: #{tpu_custom_call.1} parent=1 // loop_body
      %s18 = ssub.s32 %s13, 1
      %s19 = ssub.s32 %s13, 2
      %s26 = sadd.s32 1, %s21
      %p27 = scmp.ge.s32.totalorder %s26, 2
      %s28 = scalar_select %p27, 0, %s26
      %s29 = sadd.s32 1, %s20
      %s30 = scalar_select %p27, %s29, %s20
      %p31 = scmp.ge.s32.totalorder %s30, 1
      %s32 = scalar_select %p31, 0, %s30
      %s33 = ssub.s32 %s20, %s32
      %s34 = ssub.s32 %s21, %s28
      %s35 = sor.u32 %s33, %s34
      %p36 = scmp.eq.s32.totalorder %s35, 0
      %s38 = sadd.s32 %s37, 1
      %s39 = scalar_select %p36, %s37, %s38
      %p42 = pneg %p36
      %p43 = scmp.eq.s32.totalorder %s13, 1
      %p44 = por %p42, %p43
      %p45 = scmp.ne.s32.totalorder %s37, %s40
      %p46 = scmp.eq.s32.totalorder %s13, 0
      %p47 = por %p45, %p46
      %p48 = scmp.ne.s32.totalorder %s37, %s40
      %p49 = scmp.eq.s32.totalorder %s18, 1
      %p50 = por %p48, %p49
      %p51 = scmp.ne.s32.totalorder %s40, %s41
      %p52 = scmp.eq.s32.totalorder %s18, 0
      %p53 = por %p51, %p52
      %p54 = scmp.ne.s32.totalorder %s40, %s41
      %p55 = scmp.eq.s32.totalorder %s19, 1
      %p56 = por %p54, %p55
      %p58 = scmp.ne.s32.totalorder %s41, %s57
      %p59 = scmp.eq.s32.totalorder %s19, 0
      %p60 = por %p58, %p59
      %s61 = ssub.s32 %s20, %s32
      %s62 = ssub.s32 %s21, %s28
      %s63 = sor.u32 %s61, %s62
      %p64 = scmp.eq.s32.totalorder %s63, 0
      %s66 = sadd.s32 %s65, 1
      %s67 = scalar_select %p64, %s65, %s66
      %p70 = pneg %p64
      %p71 = scmp.eq.s32.totalorder %s13, 1
      %p72 = por %p70, %p71
      %p73 = scmp.ne.s32.totalorder %s65, %s68
      %p74 = scmp.eq.s32.totalorder %s13, 0
      %p75 = por %p73, %p74
      %p76 = scmp.ne.s32.totalorder %s65, %s68
      %p77 = scmp.eq.s32.totalorder %s18, 1
      %p78 = por %p76, %p77
      %p79 = scmp.ne.s32.totalorder %s68, %s69
      %p80 = scmp.eq.s32.totalorder %s18, 0
      %p81 = por %p79, %p80
      %p82 = scmp.ne.s32.totalorder %s68, %s69
      %p83 = scmp.eq.s32.totalorder %s19, 1
      %p84 = por %p82, %p83
      %p86 = scmp.ne.s32.totalorder %s69, %s85
      %p87 = scmp.eq.s32.totalorder %s19, 0
      %p88 = por %p86, %p87
      %p89 = scmp.le.s32.totalorder 1, %s13
      %p90 = scmp.lt.s32.totalorder %s13, 3
      %p91 = pnand %p89, %p90
      %p92 = pneg %p91
      // Predicated region
      $region9: #{tpu_custom_call.1} parent=5 // pred_check
        _
      $region10: #{tpu_custom_call.1} parent=5 // pred_check_branch
        %94 = sbr.rel (%p91) target = $region12
      $region11: #{tpu_custom_call.1} parent=5 // pred_region
        %s95 = ssub.s32 %s13, 1
      $region12: #{tpu_custom_call.1} parent=5 // pred_fallthru
        _
      %p96 = scmp.lt.s32.totalorder %s13, 2
      // Predicated region
      $region13: #{tpu_custom_call.1} parent=5 // pred_check
        %p97 = pneg %p96
      $region14: #{tpu_custom_call.1} parent=5 // pred_check_branch
        %99 = sbr.rel (%p97) target = $region16
      $region15: #{tpu_custom_call.1} parent=5 // pred_region
        // Predicated region
        $region17: #{tpu_custom_call.1} parent=15 // pred_check
          %p100 = pneg %p47
        $region18: #{tpu_custom_call.1} parent=15 // pred_check_branch
          %102 = sbr.rel (%p100) target = $region20
        $region19: #{tpu_custom_call.1} parent=15 // pred_region
          %s103 = sand.u32 %s37, 1
          %s104 = scalar_lea.sflag [#allocation3], %s103
          %s105 = sand.u32 %s37, 1
          %s106 = smul.addr %s105, 8
          %s107 = scalar_lea.vmem [#allocation2], %s106
          %s109 = ssub.s32 128, 128
          %110 = vsyncadd %s104, %s109
          %s111 = smul.addr %s20, 2
          %s112 = sadd.s32 %s21, %s111
          %s113 = smul.addr %s112, 128
          %s114 = scalar_lea.hbm %s0, %s113
          %s116 = sshll.u32 %s107, 4
          %s117 = int_to_ptr.vmem [resolvable:$true] %s116
          %119 = dma.hbm_to_vmem [thread:$0]  %s114, 128, %s117, %s104
        $region20: #{tpu_custom_call.1} parent=15 // pred_fallthru
          _
      $region16: #{tpu_custom_call.1} parent=5 // pred_fallthru
        _
      %p120 = scmp.le.s32.totalorder 1, %s13
      %p121 = scmp.lt.s32.totalorder %s13, 3
      %p122 = pnand %p120, %p121
      %p123 = pneg %p122
      // Predicated region
      $region21: #{tpu_custom_call.1} parent=5 // pred_check
        _
      $region22: #{tpu_custom_call.1} parent=5 // pred_check_branch
        %125 = sbr.rel (%p122) target = $region24
      $region23: #{tpu_custom_call.1} parent=5 // pred_region
        %s126 = ssub.s32 %s13, 1
        %s127 = sand.u32 %s40, 1
        %s128 = scalar_lea.sflag [#allocation3], %s127
        %s129 = sand.u32 %s40, 1
        %s130 = smul.addr %s129, 8
        %s131 = scalar_lea.vmem [#allocation2], %s130
        // Predicated region
        $region25: #{tpu_custom_call.1} parent=23 // pred_check
          %p132 = pneg %p53
        $region26: #{tpu_custom_call.1} parent=23 // pred_check_branch
          %134 = sbr.rel (%p132) target = $region28
        $region27: #{tpu_custom_call.1} parent=23 // pred_region
          %135 = dma.done %s128, 128
        $region28: #{tpu_custom_call.1} parent=23 // pred_fallthru
          _
        %s136 = sand.u32 %s40, 1
        %s137 = scalar_lea.sflag [#allocation3], %s136
        %s138 = sand.u32 %s40, 1
        %s139 = smul.addr %s138, 8
        %s140 = scalar_lea.vmem [#allocation2], %s139
        %p141 = pneg %p53
        %p142 = pneg %p50
        %p143 = pneg %p81
        %p144 = pneg %p78
        %s145 = sand.u32 %s68, 1
        %s146 = scalar_lea.sflag [#allocation4], %s145
        %s147 = sand.u32 %s68, 1
        %s148 = smul.addr %s147, 8
        %s149 = scalar_lea.vmem [#allocation5], %s148
        %v150 = vlaneseq
        %v151 = vshrl.u32 %v150, 7
        %vm152 = vcmp.lt.s32.totalorder %v151, 0
        %v153 = vsub.s32 0, %v151
        %v154 = vsel %vm152, %v153, %v151
        %v155 = vmul.u32.u64.compose %v154, 2863311531
        %v156 = vextract.low.u32 %v155
        %v157 = vextract.high.u32 %v155
        %v158 = vshrl.u32 %v157, 1
        %v159 = vmul.u32 %v158, 3
        %v160 = vsub.s32 %v154, %v159
        %v161 = vsub.s32 0, %v160
        %v162 = vsel %vm152, %v161, %v160
        %vm163 = vcmp.ne.s32.totalorder %v162, 0
        %vm164 = vcmp.lt.s32.totalorder %v162, 0
        %vm165 = vmand %vm164, %vm163
        %v166 = vadd.s32 %v162, 3
        %v167 = vsel %vm165, %v166, %v162
        %vm168 = vcmp.eq.s32.totalorder %v167, 1
        %v169 = vsel %vm168, 0.24348423, 0.24703279
        %v170 = vsel %vm168, 0.48215896, 0.4914009
        %vm171 = vcmp.eq.s32.totalorder %v167, 2
        %v172 = vsel %vm171, 0.26158753, %v169
        %v173 = vsel %vm171, 0.4465308, %v170
        %v174 = vld [vmem:[%s131] sm:$0x3f]
        %v175 = vmul.f32 %v174, %v172
        %v176 = vadd.f32 %v175, %v173
        %177 = vst [vmem:[%s149] sm:$0x3f] %v176
        %s178 = sand.u32 %s68, 1
        %s179 = scalar_lea.sflag [#allocation4], %s178
        %s180 = sand.u32 %s68, 1
        %s181 = smul.addr %s180, 8
        %s182 = scalar_lea.vmem [#allocation5], %s181
        // Predicated region
        $region29: #{tpu_custom_call.1} parent=23 // pred_check
          %p183 = pneg %p78
        $region30: #{tpu_custom_call.1} parent=23 // pred_check_branch
          %185 = sbr.rel (%p183) target = $region32
        $region31: #{tpu_custom_call.1} parent=23 // pred_region
          %s187 = ssub.s32 128, 128
          %188 = vsyncadd %s179, %s187
          %s189 = smul.addr %s22, 2
          %s190 = sadd.s32 %s23, %s189
          %s191 = smul.addr %s190, 128
          %s192 = scalar_lea.hbm %s1, %s191
          %s194 = sshll.u32 %s182, 4
          %s195 = int_to_ptr.vmem [resolvable:$true] %s194
          %197 = dma.vmem_to_hbm [thread:$0]  %s195, 128, %s192, %s179
        $region32: #{tpu_custom_call.1} parent=23 // pred_fallthru
          _
      $region24: #{tpu_custom_call.1} parent=5 // pred_fallthru
        _
      %p198 = scmp.le.s32.totalorder 2, %s13
      // Predicated region
      $region33: #{tpu_custom_call.1} parent=5 // pred_check
        %p199 = pneg %p198
      $region34: #{tpu_custom_call.1} parent=5 // pred_check_branch
        %201 = sbr.rel (%p199) target = $region36
      $region35: #{tpu_custom_call.1} parent=5 // pred_region
        %s202 = ssub.s32 %s13, 2
        // Predicated region
        $region37: #{tpu_custom_call.1} parent=35 // pred_check
          %p203 = pneg %p84
        $region38: #{tpu_custom_call.1} parent=35 // pred_check_branch
          %205 = sbr.rel (%p203) target = $region40
        $region39: #{tpu_custom_call.1} parent=35 // pred_region
          %s206 = sand.u32 %s69, 1
          %s207 = scalar_lea.sflag [#allocation4], %s206
          %s208 = sand.u32 %s69, 1
          %s209 = smul.addr %s208, 8
          %s210 = scalar_lea.vmem [#allocation5], %s209
          %211 = dma.done %s207, 128
        $region40: #{tpu_custom_call.1} parent=35 // pred_fallthru
          _
      $region36: #{tpu_custom_call.1} parent=5 // pred_fallthru
        _
    $region6: #{tpu_custom_call.1} parent=1 // loop_footer
      %s17 = sadd.s32 1, %s13
    $region7: #{tpu_custom_call.1} parent=1 // loop_footer_branch
      %12 = sbr.rel target = $region3
    $region8: #{tpu_custom_call.1} parent=1 // loop_exit
      _
    %212 = vsyncpa [#allocation3], 1
    %s213 = scalar_lea.sflag [#allocation3], 1
    %214 = vsyncpa %s213, 1
    %215 = vsyncpa [#allocation4], 1
    %s216 = scalar_lea.sflag [#allocation4], 1
    %217 = vsyncpa %s216, 1

</llo_original>
